<compile_context>
chip_gen: v7x
topology: tpu7x:2x2x1
jax: 0.10.0
libtpu: 0.0.40
codegen_flags: <defaults>
</compile_context>

<pallas_src>
import functools

import jax
import jax.numpy as jnp
import numpy as np
from jax.experimental import pallas as pl
from jax.experimental.pallas import tpu as pltpu


def mingru_kernel(x_ref, w_hg_ref, w_out_ref, out_ref, hn_ref,
                  ch_scr, val_scr, *, sub_tile):
    # x_ref:     (Tc, Bb, Din)   time-major input chunk
    # w_hg_ref:  (Din, 2*Hp)     fused [hidden | gate] projection (pad cols = 0)
    # w_out_ref: (Hp, Dp)        output projection (pad rows = 0)
    # out_ref:   (Tc, Bb, Dp)    output chunk
    # hn_ref:    (Bb, Hp)        last hidden state; resident across the time
    #                            axis, doubles as the h_{t-1} carry
    # ch_scr:    (Tc, Bb, Hp)    coeff_t, overwritten in place with h_t
    # val_scr:   (Tc, Bb, Hp)    value_t
    Tc, Bb, Din = x_ref.shape
    Hp, Dp = w_out_ref.shape
    mm_dtype = w_hg_ref.dtype

    # Training mode: h_0 = 0 at the first time chunk of every batch block.
    @pl.when(pl.program_id(1) == 0)
    def _():
        hn_ref[...] = jnp.zeros_like(hn_ref)

    # ---- fused input projection: one MXU dot for hidden AND gate ----
    x2 = x_ref[...].reshape(Tc * Bb, Din).astype(mm_dtype)
    proj = jnp.dot(x2, w_hg_ref[...], preferred_element_type=jnp.float32)
    hidden = proj[:, :Hp]                 # lane-aligned (Hp % 128 == 0)
    gate = proj[:, Hp:]

    # ---- gate math in the linear domain (bulk, off the serial chain) ----
    #   z       = sigmoid(gate)
    #   coeff_t = exp(-softplus(gate))               = 1 - z
    #   value_t = exp(-softplus(-gate) + log g(h~))  = z * g(hidden)
    z = jax.nn.sigmoid(gate)
    g_h = jnp.where(hidden >= 0.0, hidden + 0.5, jax.nn.sigmoid(hidden))
    ch_scr[...] = (1.0 - z).reshape(Tc, Bb, Hp)
    val_scr[...] = (z * g_h).reshape(Tc, Bb, Hp)

    # ---- serial recurrence + interleaved output projection ----
    #   h_t = coeff_t * h_{t-1} + value_t          (one FMA per step, VALU)
    # Fully unrolled python-for keeps the chunk one flat region so each
    # sub-tile's out-projection GEMM (MXU slot) hides under the next
    # sub-tile's serial chain.
    h = hn_ref[...]
    for s0 in range(0, Tc, sub_tile):
        for i in range(sub_tile):
            t = s0 + i
            h = ch_scr[t] * h + val_scr[t]
            ch_scr[t] = h                 # reuse coeff slot: keeps h_t
        h_sub = ch_scr[s0:s0 + sub_tile].reshape(sub_tile * Bb, Hp)
        out = jnp.dot(h_sub.astype(mm_dtype), w_out_ref[...],
                      preferred_element_type=jnp.float32)
        out_ref[s0:s0 + sub_tile] = out.reshape(sub_tile, Bb, Dp).astype(
            out_ref.dtype)

    hn_ref[...] = h                       # last time-chunk's write is kept


def _ceil_to(n, m):
    return ((n + m - 1) // m) * m


def _padded_bytes(shape, itemsize=4):
    s = list(shape)
    if len(s) >= 1:
        s[-1] = _ceil_to(s[-1], 128)
    if len(s) >= 2:
        s[-2] = _ceil_to(s[-2], 8)
    n = 1
    for d in s:
        n *= d
    return n * itemsize


def _vmem_budget_bytes():
    # Generation-aware: ~80% of physical VMEM (64 MiB/TC on v7x, 128 MiB on
    # v5e/v6e); conservative fallback if the query is unavailable.
    try:
        cap = int(pltpu.get_tpu_info().vmem_capacity_bytes)
    except Exception:
        cap = 64 << 20
    return max(16 << 20, int(cap * 0.8))


def _chunk_footprint_bytes(t_blk, b_blk, din, hp, dp):
    act = 2 * (_padded_bytes((t_blk, b_blk, din)) +   # x block, double-buffered
               _padded_bytes((t_blk, b_blk, dp)))     # out block, double-buffered
    scr = 2 * _padded_bytes((t_blk, b_blk, hp))       # coeff/h + value scratch
    wts = 2 * (_padded_bytes((din, 2 * hp)) +         # weights (double-buffered)
               _padded_bytes((hp, dp)))
    hn = 2 * _padded_bytes((b_blk, hp))
    return act + scr + wts + hn + (2 << 20)


def _choose_batch_block(B):
    # Multiple of 8 (sublane), as large as possible for ILP in the serial
    # chain, but keep >= 2 blocks when B allows (v7x megacore).
    for cand in (64, 32, 16, 8):
        if B >= 2 * cand:
            return cand
    return 8


def _choose_time_block(T, b_blk, din, hp, dp, budget):
    cands = sorted({c for c in (256, 128, 64, 32, 16, 8, 4, 2, 1, min(T, 256))
                    if c >= 1 and T % c == 0}, reverse=True)
    for c in cands:
        if _chunk_footprint_bytes(c, b_blk, din, hp, dp) <= budget:
            return c
    return cands[-1]


def _choose_sub_tile(t_blk):
    for cand in (32, 16, 8, 4, 2, 1):
        if t_blk % cand == 0:
            return cand
    return 1


def mingru_forward(x, w_hidden_gate, w_out, *, use_bf16_matmul=False):
    """Training-mode MinGRU forward (h_0 = zeros).

    x:             (B, T, Din) f32
    w_hidden_gate: (2H, Din)  = nn.Linear(input_dim, 2*hidden_dim, bias=False).weight
    w_out:         (Dout, H)  = nn.Linear(hidden_dim, output_dim, bias=False).weight
    Returns (out (B, T, Dout), h_n (B, 1, H)) like the torch module.
    """
    B, T, Din = x.shape
    H = w_hidden_gate.shape[0] // 2
    Dout = w_out.shape[0]

    Hp = _ceil_to(H, 128)
    Dp = _ceil_to(Dout, 128)
    mm_dtype = jnp.bfloat16 if use_bf16_matmul else jnp.float32

    # Fused, zero-padded weights: cols [0:H] hidden, [Hp:Hp+H] gate.
    w_hg_f = jnp.zeros((Din, 2 * Hp), jnp.float32)
    w_hg_f = w_hg_f.at[:, :H].set(jnp.transpose(w_hidden_gate[:H]))
    w_hg_f = w_hg_f.at[:, Hp:Hp + H].set(jnp.transpose(w_hidden_gate[H:]))
    w_out_f = jnp.zeros((Hp, Dp), jnp.float32)
    w_out_f = w_out_f.at[:H, :Dout].set(jnp.transpose(w_out))
    w_hg_f = w_hg_f.astype(mm_dtype)      # cast ONCE here, not per grid step
    w_out_f = w_out_f.astype(mm_dtype)

    b_blk = _choose_batch_block(B)
    Bp = _ceil_to(B, b_blk)
    budget = _vmem_budget_bytes()
    t_blk = _choose_time_block(T, b_blk, Din, Hp, Dp, budget)
    sub_tile = _choose_sub_tile(t_blk)
    grid = (Bp // b_blk, T // t_blk)

    # TODO(synk): remove these two wrapper HBM transposes via an in-kernel
    #   pltpu.einshape relayout (matters most on bandwidth-poor v5e).
    x_p = x if Bp == B else jnp.pad(x, ((0, Bp - B), (0, 0), (0, 0)))
    x_tm = jnp.transpose(x_p, (1, 0, 2)).astype(jnp.float32)   # (T, Bp, Din)

    footprint = _chunk_footprint_bytes(t_blk, b_blk, Din, Hp, Dp)
    vmem_limit = int(min(budget, max(footprint, 32 << 20)))

    kernel = functools.partial(mingru_kernel, sub_tile=sub_tile)

    out_tm, h_last = pl.pallas_call(
        kernel,
        out_shape=(
            jax.ShapeDtypeStruct((T, Bp, Dp), jnp.float32),
            jax.ShapeDtypeStruct((Bp, Hp), jnp.float32),
        ),
        grid=grid,
        in_specs=[
            pl.BlockSpec((t_blk, b_blk, Din), lambda b, t: (t, b, 0)),
            pl.BlockSpec((Din, 2 * Hp), lambda b, t: (0, 0)),
            pl.BlockSpec((Hp, Dp), lambda b, t: (0, 0)),
        ],
        out_specs=(
            pl.BlockSpec((t_blk, b_blk, Dp), lambda b, t: (t, b, 0)),
            pl.BlockSpec((b_blk, Hp), lambda b, t: (b, 0)),
        ),
        scratch_shapes=[
            pltpu.VMEM((t_blk, b_blk, Hp), jnp.float32),   # coeff_t, then h_t
            pltpu.VMEM((t_blk, b_blk, Hp), jnp.float32),   # value_t
        ],
        compiler_params=pltpu.CompilerParams(
            dimension_semantics=("parallel", "arbitrary"),
            vmem_limit_bytes=vmem_limit,
        ),
    )(x_tm, w_hg_f, w_out_f)

    out = jnp.transpose(out_tm, (1, 0, 2))[:B, :, :Dout]   # (B, T, Dout)
    h_n = h_last[:B, :H][:, None, :]                       # (B, 1, H)
    return out, h_n


def mingru_reference(x, w_hidden_gate, w_out):
    """Pure-JAX log-domain scan reproducing the torch module's training forward."""
    B, T, _ = x.shape
    H = w_hidden_gate.shape[0] // 2
    w_h_t = jnp.transpose(w_hidden_gate[:H])
    w_z_t = jnp.transpose(w_hidden_gate[H:])
    w_out_t = jnp.transpose(w_out)
    hidden = x @ w_h_t
    gate = x @ w_z_t
    log_coeffs = -jax.nn.softplus(gate)
    log_values = -jax.nn.softplus(-gate) + jnp.where(
        hidden >= 0.0,
        jnp.log(jax.nn.relu(hidden) + 0.5),
        -jax.nn.softplus(-hidden),
    )
    log_h = jnp.full((B, H), -jnp.inf, dtype=jnp.float32)
    hs = []
    for t in range(T):
        log_h = jnp.logaddexp(log_coeffs[:, t] + log_h, log_values[:, t])
        hs.append(jnp.exp(log_h))
    h = jnp.stack(hs, axis=1)                     # (B, T, H)
    return h @ w_out_t, h[:, -1:, :]


if __name__ == "__main__":
    # Small shapes consistent with the module (B x T x input_dim sequences).
    B, T, Din, H, Dout = 16, 8, 16, 32, 16

    key = jax.random.PRNGKey(0)
    kx, kw1, kw2 = jax.random.split(key, 3)
    x = jax.random.normal(kx, (B, T, Din), dtype=jnp.float32)

    # nn.Linear(input_dim, 2*hidden_dim, bias=False): weight (2H, Din),
    # init ~ U(-1/sqrt(Din), 1/sqrt(Din)).
    b1 = 1.0 / np.sqrt(Din)
    w_hg = jax.random.uniform(kw1, (2 * H, Din), jnp.float32, -b1, b1)
    # nn.Linear(hidden_dim, output_dim, bias=False): weight (Dout, H).
    b2 = 1.0 / np.sqrt(H)
    w_out = jax.random.uniform(kw2, (Dout, H), jnp.float32, -b2, b2)

    out, h_n = mingru_forward(x, w_hg, w_out)
    out = jax.block_until_ready(out)
    h_n = jax.block_until_ready(h_n)

    out_ref, h_n_ref = mingru_reference(x, w_hg, w_out)
    np.testing.assert_allclose(np.asarray(out), np.asarray(out_ref),
                               rtol=1e-5, atol=1e-5)
    np.testing.assert_allclose(np.asarray(h_n), np.asarray(h_n_ref),
                               rtol=1e-5, atol=1e-5)

    assert out.shape == (B, T, Dout) and h_n.shape == (B, 1, H)
    print("KERNEL_OK")
</pallas_src>

<mosaic_0001>
module attributes {stable_mosaic.version = 11 : i64} {
  func.func @mingru_kernel(%arg0: i32, %arg1: i32, %arg2: memref<8x8x16xf32, #tpu.memory_space<vmem>>, %arg3: memref<16x256xf32, #tpu.memory_space<vmem>>, %arg4: memref<128x128xf32, #tpu.memory_space<vmem>>, %arg5: memref<8x8x128xf32, #tpu.memory_space<vmem>>, %arg6: memref<8x128xf32, #tpu.memory_space<vmem>>, %arg7: memref<8x8x128xf32, #tpu.memory_space<vmem>>, %arg8: memref<8x8x128xf32, #tpu.memory_space<vmem>>) attributes {dimension_semantics = [#tpu.dimension_semantics<parallel>, #tpu.dimension_semantics<arbitrary>], iteration_bounds = array<i64: 2, 1>, scalar_prefetch = 0 : i64, scratch_operands = 2 : i64, tpu.core_type = #tpu.core_type<tc>, window_params = [{transform_indices = @transform_0, window_bounds = array<i64: 8, 8, 16>}, {pipeline_mode = #tpu.pipeline_mode<synchronous>, transform_indices = @transform_1, window_bounds = array<i64: 16, 256>}, {pipeline_mode = #tpu.pipeline_mode<synchronous>, transform_indices = @transform_2, window_bounds = array<i64: 128, 128>}, {transform_indices = @transform_3, window_bounds = array<i64: 8, 8, 128>}, {transform_indices = @transform_4, window_bounds = array<i64: 8, 128>}]} {
    %c0_i32 = arith.constant 0 : i32
    %0 = arith.cmpi eq, %arg1, %c0_i32 : i32
    %1 = arith.extui %0 : i1 to i32
    %c0_i32_0 = arith.constant 0 : i32
    %2 = arith.cmpi ne, %1, %c0_i32_0 : i32
    scf.if %2 {
      %cst_94 = arith.constant 0.000000e+00 : f32
      %111 = vector.broadcast %cst_94 : f32 to vector<8x128xf32>
      %c0_95 = arith.constant 0 : index
      %c0_96 = arith.constant 0 : index
      %112 = vector.load %arg6[%c0_95, %c0_96] : memref<8x128xf32, #tpu.memory_space<vmem>>, vector<8x128xf32>
      tpu.vector_store %arg6[%c0_95, %c0_96], %111 {strides = array<i32>} : memref<8x128xf32, #tpu.memory_space<vmem>>, vector<8x128xf32>,
    } else {
    }
    %c0 = arith.constant 0 : index
    %c0_1 = arith.constant 0 : index
    %c0_2 = arith.constant 0 : index
    %3 = vector.load %arg2[%c0, %c0_1, %c0_2] : memref<8x8x16xf32, #tpu.memory_space<vmem>>, vector<8x8x16xf32>
    %4 = vector.shape_cast %3 : vector<8x8x16xf32> to vector<64x16xf32>
    %c0_3 = arith.constant 0 : index
    %c0_4 = arith.constant 0 : index
    %5 = vector.load %arg3[%c0_3, %c0_4] : memref<16x256xf32, #tpu.memory_space<vmem>>, vector<16x256xf32>
    %cst = arith.constant dense<0.000000e+00> : vector<64x256xf32>
    %6 = tpu.matmul %4, %5, %cst {dimension_numbers = #tpu.dot_dimension_numbers<[1], [0], [0], [1], [0, 0, 1, 1], [], []>} : vector<64x16xf32>, vector<16x256xf32>, vector<64x256xf32> -> vector<64x256xf32>
    %7 = vector.extract_strided_slice %6 {offsets = [0, 0], sizes = [64, 128], strides = [1, 1]} : vector<64x256xf32> to vector<64x128xf32>
    %8 = vector.extract_strided_slice %6 {offsets = [0, 128], sizes = [64, 128], strides = [1, 1]} : vector<64x256xf32> to vector<64x128xf32>
    %9 = arith.negf %8 : vector<64x128xf32>
    %10 = math.exp %9 : vector<64x128xf32>
    %cst_5 = arith.constant 1.000000e+00 : f32
    %11 = vector.broadcast %cst_5 : f32 to vector<64x128xf32>
    %12 = arith.addf %11, %10 : vector<64x128xf32>
    %13 = arith.divf %11, %12 : vector<64x128xf32>
    %cst_6 = arith.constant 0.000000e+00 : f32
    %14 = vector.broadcast %cst_6 : f32 to vector<64x128xf32>
    %15 = arith.cmpf oge, %7, %14 : vector<64x128xf32>
    %cst_7 = arith.constant 5.000000e-01 : f32
    %16 = vector.broadcast %cst_7 : f32 to vector<64x128xf32>
    %17 = arith.addf %7, %16 : vector<64x128xf32>
    %18 = arith.negf %7 : vector<64x128xf32>
    %19 = math.exp %18 : vector<64x128xf32>
    %cst_8 = arith.constant 1.000000e+00 : f32
    %20 = vector.broadcast %cst_8 : f32 to vector<64x128xf32>
    %21 = arith.addf %20, %19 : vector<64x128xf32>
    %22 = arith.divf %20, %21 : vector<64x128xf32>
    %23 = arith.select %15, %17, %22 : vector<64x128xi1>, vector<64x128xf32>
    %cst_9 = arith.constant 1.000000e+00 : f32
    %24 = vector.broadcast %cst_9 : f32 to vector<64x128xf32>
    %25 = arith.subf %24, %13 : vector<64x128xf32>
    %26 = vector.shape_cast %25 : vector<64x128xf32> to vector<8x8x128xf32>
    %c0_10 = arith.constant 0 : index
    %c0_11 = arith.constant 0 : index
    %c0_12 = arith.constant 0 : index
    %27 = vector.load %arg7[%c0_10, %c0_11, %c0_12] : memref<8x8x128xf32, #tpu.memory_space<vmem>>, vector<8x8x128xf32>
    tpu.vector_store %arg7[%c0_10, %c0_11, %c0_12], %26 {strides = array<i32>} : memref<8x8x128xf32, #tpu.memory_space<vmem>>, vector<8x8x128xf32>,
    %28 = arith.mulf %13, %23 : vector<64x128xf32>
    %29 = vector.shape_cast %28 : vector<64x128xf32> to vector<8x8x128xf32>
    %c0_13 = arith.constant 0 : index
    %c0_14 = arith.constant 0 : index
    %c0_15 = arith.constant 0 : index
    %30 = vector.load %arg8[%c0_13, %c0_14, %c0_15] : memref<8x8x128xf32, #tpu.memory_space<vmem>>, vector<8x8x128xf32>
    tpu.vector_store %arg8[%c0_13, %c0_14, %c0_15], %29 {strides = array<i32>} : memref<8x8x128xf32, #tpu.memory_space<vmem>>, vector<8x8x128xf32>,
    %c0_16 = arith.constant 0 : index
    %c0_17 = arith.constant 0 : index
    %31 = vector.load %arg6[%c0_16, %c0_17] : memref<8x128xf32, #tpu.memory_space<vmem>>, vector<8x128xf32>
    %c0_18 = arith.constant 0 : index
    %c0_19 = arith.constant 0 : index
    %c0_20 = arith.constant 0 : index
    %32 = vector.load %arg7[%c0_18, %c0_19, %c0_20] : memref<8x8x128xf32, #tpu.memory_space<vmem>>, vector<1x8x128xf32>
    %33 = vector.shape_cast %32 : vector<1x8x128xf32> to vector<8x128xf32>
    %34 = arith.mulf %33, %31 : vector<8x128xf32>
    %c0_21 = arith.constant 0 : index
    %c0_22 = arith.constant 0 : index
    %c0_23 = arith.constant 0 : index
    %35 = vector.load %arg8[%c0_21, %c0_22, %c0_23] : memref<8x8x128xf32, #tpu.memory_space<vmem>>, vector<1x8x128xf32>
    %36 = vector.shape_cast %35 : vector<1x8x128xf32> to vector<8x128xf32>
    %37 = arith.addf %34, %36 : vector<8x128xf32>
    %c0_24 = arith.constant 0 : index
    %c0_25 = arith.constant 0 : index
    %c0_26 = arith.constant 0 : index
    %38 = vector.load %arg7[%c0_24, %c0_25, %c0_26] : memref<8x8x128xf32, #tpu.memory_space<vmem>>, vector<1x8x128xf32>
    %39 = vector.shape_cast %38 : vector<1x8x128xf32> to vector<8x128xf32>
    %40 = vector.shape_cast %37 : vector<8x128xf32> to vector<1x8x128xf32>
    tpu.vector_store %arg7[%c0_24, %c0_25, %c0_26], %40 {strides = array<i32>} : memref<8x8x128xf32, #tpu.memory_space<vmem>>, vector<1x8x128xf32>,
    %c1 = arith.constant 1 : index
    %c0_27 = arith.constant 0 : index
    %c0_28 = arith.constant 0 : index
    %41 = vector.load %arg7[%c1, %c0_27, %c0_28] : memref<8x8x128xf32, #tpu.memory_space<vmem>>, vector<1x8x128xf32>
    %42 = vector.shape_cast %41 : vector<1x8x128xf32> to vector<8x128xf32>
    %43 = arith.mulf %42, %37 : vector<8x128xf32>
    %c1_29 = arith.constant 1 : index
    %c0_30 = arith.constant 0 : index
    %c0_31 = arith.constant 0 : index
    %44 = vector.load %arg8[%c1_29, %c0_30, %c0_31] : memref<8x8x128xf32, #tpu.memory_space<vmem>>, vector<1x8x128xf32>
    %45 = vector.shape_cast %44 : vector<1x8x128xf32> to vector<8x128xf32>
    %46 = arith.addf %43, %45 : vector<8x128xf32>
    %c1_32 = arith.constant 1 : index
    %c0_33 = arith.constant 0 : index
    %c0_34 = arith.constant 0 : index
    %47 = vector.load %arg7[%c1_32, %c0_33, %c0_34] : memref<8x8x128xf32, #tpu.memory_space<vmem>>, vector<1x8x128xf32>
    %48 = vector.shape_cast %47 : vector<1x8x128xf32> to vector<8x128xf32>
    %49 = vector.shape_cast %46 : vector<8x128xf32> to vector<1x8x128xf32>
    tpu.vector_store %arg7[%c1_32, %c0_33, %c0_34], %49 {strides = array<i32>} : memref<8x8x128xf32, #tpu.memory_space<vmem>>, vector<1x8x128xf32>,
    %c2 = arith.constant 2 : index
    %c0_35 = arith.constant 0 : index
    %c0_36 = arith.constant 0 : index
    %50 = vector.load %arg7[%c2, %c0_35, %c0_36] : memref<8x8x128xf32, #tpu.memory_space<vmem>>, vector<1x8x128xf32>
    %51 = vector.shape_cast %50 : vector<1x8x128xf32> to vector<8x128xf32>
    %52 = arith.mulf %51, %46 : vector<8x128xf32>
    %c2_37 = arith.constant 2 : index
    %c0_38 = arith.constant 0 : index
    %c0_39 = arith.constant 0 : index
    %53 = vector.load %arg8[%c2_37, %c0_38, %c0_39] : memref<8x8x128xf32, #tpu.memory_space<vmem>>, vector<1x8x128xf32>
    %54 = vector.shape_cast %53 : vector<1x8x128xf32> to vector<8x128xf32>
    %55 = arith.addf %52, %54 : vector<8x128xf32>
    %c2_40 = arith.constant 2 : index
    %c0_41 = arith.constant 0 : index
    %c0_42 = arith.constant 0 : index
    %56 = vector.load %arg7[%c2_40, %c0_41, %c0_42] : memref<8x8x128xf32, #tpu.memory_space<vmem>>, vector<1x8x128xf32>
    %57 = vector.shape_cast %56 : vector<1x8x128xf32> to vector<8x128xf32>
    %58 = vector.shape_cast %55 : vector<8x128xf32> to vector<1x8x128xf32>
    tpu.vector_store %arg7[%c2_40, %c0_41, %c0_42], %58 {strides = array<i32>} : memref<8x8x128xf32, #tpu.memory_space<vmem>>, vector<1x8x128xf32>,
    %c3 = arith.constant 3 : index
    %c0_43 = arith.constant 0 : index
    %c0_44 = arith.constant 0 : index
    %59 = vector.load %arg7[%c3, %c0_43, %c0_44] : memref<8x8x128xf32, #tpu.memory_space<vmem>>, vector<1x8x128xf32>
    %60 = vector.shape_cast %59 : vector<1x8x128xf32> to vector<8x128xf32>
    %61 = arith.mulf %60, %55 : vector<8x128xf32>
    %c3_45 = arith.constant 3 : index
    %c0_46 = arith.constant 0 : index
    %c0_47 = arith.constant 0 : index
    %62 = vector.load %arg8[%c3_45, %c0_46, %c0_47] : memref<8x8x128xf32, #tpu.memory_space<vmem>>, vector<1x8x128xf32>
    %63 = vector.shape_cast %62 : vector<1x8x128xf32> to vector<8x128xf32>
    %64 = arith.addf %61, %63 : vector<8x128xf32>
    %c3_48 = arith.constant 3 : index
    %c0_49 = arith.constant 0 : index
    %c0_50 = arith.constant 0 : index
    %65 = vector.load %arg7[%c3_48, %c0_49, %c0_50] : memref<8x8x128xf32, #tpu.memory_space<vmem>>, vector<1x8x128xf32>
    %66 = vector.shape_cast %65 : vector<1x8x128xf32> to vector<8x128xf32>
    %67 = vector.shape_cast %64 : vector<8x128xf32> to vector<1x8x128xf32>
    tpu.vector_store %arg7[%c3_48, %c0_49, %c0_50], %67 {strides = array<i32>} : memref<8x8x128xf32, #tpu.memory_space<vmem>>, vector<1x8x128xf32>,
    %c4 = arith.constant 4 : index
    %c0_51 = arith.constant 0 : index
    %c0_52 = arith.constant 0 : index
    %68 = vector.load %arg7[%c4, %c0_51, %c0_52] : memref<8x8x128xf32, #tpu.memory_space<vmem>>, vector<1x8x128xf32>
    %69 = vector.shape_cast %68 : vector<1x8x128xf32> to vector<8x128xf32>
    %70 = arith.mulf %69, %64 : vector<8x128xf32>
    %c4_53 = arith.constant 4 : index
    %c0_54 = arith.constant 0 : index
    %c0_55 = arith.constant 0 : index
    %71 = vector.load %arg8[%c4_53, %c0_54, %c0_55] : memref<8x8x128xf32, #tpu.memory_space<vmem>>, vector<1x8x128xf32>
    %72 = vector.shape_cast %71 : vector<1x8x128xf32> to vector<8x128xf32>
    %73 = arith.addf %70, %72 : vector<8x128xf32>
    %c4_56 = arith.constant 4 : index
    %c0_57 = arith.constant 0 : index
    %c0_58 = arith.constant 0 : index
    %74 = vector.load %arg7[%c4_56, %c0_57, %c0_58] : memref<8x8x128xf32, #tpu.memory_space<vmem>>, vector<1x8x128xf32>
    %75 = vector.shape_cast %74 : vector<1x8x128xf32> to vector<8x128xf32>
    %76 = vector.shape_cast %73 : vector<8x128xf32> to vector<1x8x128xf32>
    tpu.vector_store %arg7[%c4_56, %c0_57, %c0_58], %76 {strides = array<i32>} : memref<8x8x128xf32, #tpu.memory_space<vmem>>, vector<1x8x128xf32>,
    %c5 = arith.constant 5 : index
    %c0_59 = arith.constant 0 : index
    %c0_60 = arith.constant 0 : index
    %77 = vector.load %arg7[%c5, %c0_59, %c0_60] : memref<8x8x128xf32, #tpu.memory_space<vmem>>, vector<1x8x128xf32>
    %78 = vector.shape_cast %77 : vector<1x8x128xf32> to vector<8x128xf32>
    %79 = arith.mulf %78, %73 : vector<8x128xf32>
    %c5_61 = arith.constant 5 : index
    %c0_62 = arith.constant 0 : index
    %c0_63 = arith.constant 0 : index
    %80 = vector.load %arg8[%c5_61, %c0_62, %c0_63] : memref<8x8x128xf32, #tpu.memory_space<vmem>>, vector<1x8x128xf32>
    %81 = vector.shape_cast %80 : vector<1x8x128xf32> to vector<8x128xf32>
    %82 = arith.addf %79, %81 : vector<8x128xf32>
    %c5_64 = arith.constant 5 : index
    %c0_65 = arith.constant 0 : index
    %c0_66 = arith.constant 0 : index
    %83 = vector.load %arg7[%c5_64, %c0_65, %c0_66] : memref<8x8x128xf32, #tpu.memory_space<vmem>>, vector<1x8x128xf32>
    %84 = vector.shape_cast %83 : vector<1x8x128xf32> to vector<8x128xf32>
    %85 = vector.shape_cast %82 : vector<8x128xf32> to vector<1x8x128xf32>
    tpu.vector_store %arg7[%c5_64, %c0_65, %c0_66], %85 {strides = array<i32>} : memref<8x8x128xf32, #tpu.memory_space<vmem>>, vector<1x8x128xf32>,
    %c6 = arith.constant 6 : index
    %c0_67 = arith.constant 0 : index
    %c0_68 = arith.constant 0 : index
    %86 = vector.load %arg7[%c6, %c0_67, %c0_68] : memref<8x8x128xf32, #tpu.memory_space<vmem>>, vector<1x8x128xf32>
    %87 = vector.shape_cast %86 : vector<1x8x128xf32> to vector<8x128xf32>
    %88 = arith.mulf %87, %82 : vector<8x128xf32>
    %c6_69 = arith.constant 6 : index
    %c0_70 = arith.constant 0 : index
    %c0_71 = arith.constant 0 : index
    %89 = vector.load %arg8[%c6_69, %c0_70, %c0_71] : memref<8x8x128xf32, #tpu.memory_space<vmem>>, vector<1x8x128xf32>
    %90 = vector.shape_cast %89 : vector<1x8x128xf32> to vector<8x128xf32>
    %91 = arith.addf %88, %90 : vector<8x128xf32>
    %c6_72 = arith.constant 6 : index
    %c0_73 = arith.constant 0 : index
    %c0_74 = arith.constant 0 : index
    %92 = vector.load %arg7[%c6_72, %c0_73, %c0_74] : memref<8x8x128xf32, #tpu.memory_space<vmem>>, vector<1x8x128xf32>
    %93 = vector.shape_cast %92 : vector<1x8x128xf32> to vector<8x128xf32>
    %94 = vector.shape_cast %91 : vector<8x128xf32> to vector<1x8x128xf32>
    tpu.vector_store %arg7[%c6_72, %c0_73, %c0_74], %94 {strides = array<i32>} : memref<8x8x128xf32, #tpu.memory_space<vmem>>, vector<1x8x128xf32>,
    %c7 = arith.constant 7 : index
    %c0_75 = arith.constant 0 : index
    %c0_76 = arith.constant 0 : index
    %95 = vector.load %arg7[%c7, %c0_75, %c0_76] : memref<8x8x128xf32, #tpu.memory_space<vmem>>, vector<1x8x128xf32>
    %96 = vector.shape_cast %95 : vector<1x8x128xf32> to vector<8x128xf32>
    %97 = arith.mulf %96, %91 : vector<8x128xf32>
    %c7_77 = arith.constant 7 : index
    %c0_78 = arith.constant 0 : index
    %c0_79 = arith.constant 0 : index
    %98 = vector.load %arg8[%c7_77, %c0_78, %c0_79] : memref<8x8x128xf32, #tpu.memory_space<vmem>>, vector<1x8x128xf32>
    %99 = vector.shape_cast %98 : vector<1x8x128xf32> to vector<8x128xf32>
    %100 = arith.addf %97, %99 : vector<8x128xf32>
    %c7_80 = arith.constant 7 : index
    %c0_81 = arith.constant 0 : index
    %c0_82 = arith.constant 0 : index
    %101 = vector.load %arg7[%c7_80, %c0_81, %c0_82] : memref<8x8x128xf32, #tpu.memory_space<vmem>>, vector<1x8x128xf32>
    %102 = vector.shape_cast %101 : vector<1x8x128xf32> to vector<8x128xf32>
    %103 = vector.shape_cast %100 : vector<8x128xf32> to vector<1x8x128xf32>
    tpu.vector_store %arg7[%c7_80, %c0_81, %c0_82], %103 {strides = array<i32>} : memref<8x8x128xf32, #tpu.memory_space<vmem>>, vector<1x8x128xf32>,
    %c0_83 = arith.constant 0 : index
    %c0_84 = arith.constant 0 : index
    %c0_85 = arith.constant 0 : index
    %104 = vector.load %arg7[%c0_83, %c0_84, %c0_85] : memref<8x8x128xf32, #tpu.memory_space<vmem>>, vector<8x8x128xf32>
    %105 = vector.shape_cast %104 : vector<8x8x128xf32> to vector<64x128xf32>
    %c0_86 = arith.constant 0 : index
    %c0_87 = arith.constant 0 : index
    %106 = vector.load %arg4[%c0_86, %c0_87] : memref<128x128xf32, #tpu.memory_space<vmem>>, vector<128x128xf32>
    %cst_88 = arith.constant dense<0.000000e+00> : vector<64x128xf32>
    %107 = tpu.matmul %105, %106, %cst_88 {dimension_numbers = #tpu.dot_dimension_numbers<[1], [0], [0], [1], [0, 0, 1, 1], [], []>} : vector<64x128xf32>, vector<128x128xf32>, vector<64x128xf32> -> vector<64x128xf32>
    %108 = vector.shape_cast %107 : vector<64x128xf32> to vector<8x8x128xf32>
    %c0_89 = arith.constant 0 : index
    %c0_90 = arith.constant 0 : index
    %c0_91 = arith.constant 0 : index
    %109 = vector.load %arg5[%c0_89, %c0_90, %c0_91] : memref<8x8x128xf32, #tpu.memory_space<vmem>>, vector<8x8x128xf32>
    tpu.vector_store %arg5[%c0_89, %c0_90, %c0_91], %108 {strides = array<i32>} : memref<8x8x128xf32, #tpu.memory_space<vmem>>, vector<8x8x128xf32>,
    %c0_92 = arith.constant 0 : index
    %c0_93 = arith.constant 0 : index
    %110 = vector.load %arg6[%c0_92, %c0_93] : memref<8x128xf32, #tpu.memory_space<vmem>>, vector<8x128xf32>
    tpu.vector_store %arg6[%c0_92, %c0_93], %100 {strides = array<i32>} : memref<8x128xf32, #tpu.memory_space<vmem>>, vector<8x128xf32>,
    return
  }
  func.func @transform_0(%arg0: i32, %arg1: i32) -> (i32, i32, i32) {
    %c0_i32 = arith.constant 0 : i32
    %c0_i32_0 = arith.constant 0 : i32
    return %arg1, %arg0, %c0_i32 : i32, i32, i32
  }
  func.func @transform_1(%arg0: i32, %arg1: i32) -> (i32, i32) {
    %c0_i32 = arith.constant 0 : i32
    %c0_i32_0 = arith.constant 0 : i32
    %c0_i32_1 = arith.constant 0 : i32
    return %c0_i32, %c0_i32_0 : i32, i32
  }
  func.func @transform_2(%arg0: i32, %arg1: i32) -> (i32, i32) {
    %c0_i32 = arith.constant 0 : i32
    %c0_i32_0 = arith.constant 0 : i32
    %c0_i32_1 = arith.constant 0 : i32
    return %c0_i32, %c0_i32_0 : i32, i32
  }
  func.func @transform_3(%arg0: i32, %arg1: i32) -> (i32, i32, i32) {
    %c0_i32 = arith.constant 0 : i32
    %c0_i32_0 = arith.constant 0 : i32
    return %arg1, %arg0, %c0_i32 : i32, i32, i32
  }
  func.func @transform_4(%arg0: i32, %arg1: i32) -> (i32, i32) {
    %c0_i32 = arith.constant 0 : i32
    %c0_i32_0 = arith.constant 0 : i32
    return %arg0, %c0_i32 : i32, i32
  }
}

</mosaic_0001>

<llo_original>
// kernel: tpu_custom_call.1
$region0: #{tpu_custom_call.1}
  #allocation0 [shape = 'u32[]', space=smem, size = 0x4, offset = 0x4, fixed_abs, tag = 'smem constant byte address 0x4 - core index']
  #allocation1 [shape = 'u32[144,128]{1,0:T(1,128)}', space=vmem, size = 0x12000, scoped, tag = 'internal scratch']
  #allocation2 [shape = 'f32[8,8,128]{2,1,0:T(8,128)}', space=vmem, size = 0x8000, scoped, tag = 'scratch operand']
  #allocation3 [shape = 'f32[8,8,128]{2,1,0:T(8,128)}', space=vmem, size = 0x8000, scoped, tag = 'scratch operand']
  %s0 = inlined_call_operand.hbm [shape: f32[8,16,16], index: 0, kind: input, shape index: {}]
  %s1 = inlined_call_operand.hbm [shape: f32[16,256], index: 1, kind: input, shape index: {}]
  %s2 = inlined_call_operand.hbm [shape: f32[128,128], index: 2, kind: input, shape index: {}]
  %s3 = inlined_call_operand.hbm [shape: f32[8,16,128], index: 3, kind: output, shape index: {0}]
  %s4 = inlined_call_operand.hbm [shape: f32[16,128], index: 4, kind: output, shape index: {1}]
  %5 = xla_tuple %s3, %s4
  %s6 = sld [smem:[#allocation0]]
  $region69: #{tpu_custom_call.1} parent=0
    _
  %s8 = ssub.s32 1, %s6
  %s9 = scalar_select 0, %s8, %s6
  $region1: #{tpu_custom_call.1} parent=0
    #allocation4 [shape = 'u8[65536]{0}', space=vmem, size = 0x10000, scoped, tag = 'input window, operand 0']
    #allocation5 [shape = 's32[2]{0}', space=sflag, size = 0x8, scoped, tag = 'scoped memory for tpu_custom_call.1']
    #allocation6 [shape = 's32[2]{0}', space=sflag, size = 0x8, scoped, tag = 'scoped memory for tpu_custom_call.1']
    #allocation7 [shape = 'u8[16384]{0}', space=vmem, size = 0x4000, scoped, tag = 'input window, operand 1, single buffered']
    #allocation8 [shape = 's32[1]{0}', space=sflag, size = 0x4, scoped, tag = 'scoped memory for tpu_custom_call.1']
    #allocation9 [shape = 'u8[65536]{0}', space=vmem, size = 0x10000, scoped, tag = 'input window, operand 2, single buffered']
    #allocation10 [shape = 'u8[65536]{0}', space=vmem, size = 0x10000, scoped, tag = 'output window, operand 0']
    #allocation11 [shape = 'u8[8192]{0}', space=vmem, size = 0x2000, scoped, tag = 'output window, operand 1']
    #allocation12 [shape = 's32[2]{0}', space=sflag, size = 0x8, scoped, tag = 'scoped memory for tpu_custom_call.1']
    %10 = vsyncpa [#allocation5], 0
    %s11 = scalar_lea.sflag [#allocation5], 1
    %12 = vsyncpa %s11, 0
    %13 = vsyncpa [#allocation8], 0
    %14 = vsyncpa [#allocation6], 0
    %s15 = scalar_lea.sflag [#allocation6], 1
    %16 = vsyncpa %s15, 0
    %17 = vsyncpa [#allocation12], 0
    %s18 = scalar_lea.sflag [#allocation12], 1
    %19 = vsyncpa %s18, 0
    loop: start=0, step=1, limit=4
    $region2: #{tpu_custom_call.1} parent=1 // loop_pre_header
      _
    $region3: #{tpu_custom_call.1} parent=1 // loop_header
      %s21 = sphi 0, %s25
      %p22 = scmp.ge.s32.totalorder %s21, 4
      %s28 = sphi 0, %s40
      %s29 = sphi 0, %s36
      %s30 = sphi 0, %s28
      %s31 = sphi 0, %s29
      %s32 = sphi 0, %s30
      %s33 = sphi 0, %s31
      %s45 = sphi 0, %s47
      %s48 = sphi 0, %s45
      %s49 = sphi 0, %s48
      %s65 = sphi 0, %s49
      %s69 = sphi 0, %s69
      %s71 = sphi 0, %s69
      %s72 = sphi 0, %s71
      %s86 = sphi 0, %s72
      %s90 = sphi 0, %s90
      %s92 = sphi 0, %s90
      %s93 = sphi 0, %s92
      %s107 = sphi 0, %s93
      %s115 = sphi 0, %s117
      %s118 = sphi 0, %s115
      %s119 = sphi 0, %s118
      %s135 = sphi 0, %s119
      %s141 = sphi 0, %s143
      %s144 = sphi 0, %s141
      %s145 = sphi 0, %s144
      %s161 = sphi 0, %s145
    $region4: #{tpu_custom_call.1} parent=1 // loop_header_branch
      %24 = sbr.rel (%p22) target = $region8
    $region5: #{tpu_custom_call.1} parent=1 // loop_body
      %s26 = ssub.s32 %s21, 1
      %s27 = ssub.s32 %s21, 2
      %s34 = sadd.s32 1, %s29
      %p35 = scmp.ge.s32.totalorder %s34, 1
      %s36 = scalar_select %p35, 0, %s34
      %s37 = sadd.s32 1, %s28
      %s38 = scalar_select %p35, %s37, %s28
      %p39 = scmp.ge.s32.totalorder %s38, 2
      %s40 = scalar_select %p39, 0, %s38
      %s41 = ssub.s32 %s29, %s36
      %s42 = ssub.s32 %s28, %s40
      %s43 = sor.u32 %s41, %s42
      %p44 = scmp.eq.s32.totalorder %s43, 0
      %s46 = sadd.s32 %s45, 1
      %s47 = scalar_select %p44, %s45, %s46
      %p50 = pneg %p44
      %p51 = scmp.eq.s32.totalorder %s21, 1
      %p52 = por %p50, %p51
      %p53 = scmp.ne.s32.totalorder %s45, %s48
      %p54 = scmp.eq.s32.totalorder %s21, 0
      %p55 = por %p53, %p54
      %p56 = scmp.ne.s32.totalorder %s45, %s48
      %p57 = scmp.eq.s32.totalorder %s26, 1
      %p58 = por %p56, %p57
      %p59 = scmp.ne.s32.totalorder %s48, %s49
      %p60 = scmp.eq.s32.totalorder %s26, 0
      %p61 = por %p59, %p60
      %p62 = scmp.ne.s32.totalorder %s48, %s49
      %p63 = scmp.eq.s32.totalorder %s27, 1
      %p64 = por %p62, %p63
      %p66 = scmp.ne.s32.totalorder %s49, %s65
      %p67 = scmp.eq.s32.totalorder %s27, 0
      %p68 = por %p66, %p67
      %s70 = sadd.s32 %s69, 1
      %p73 = scmp.eq.s32.totalorder %s21, 1
      %p74 = scmp.ne.s32.totalorder %s69, %s71
      %p75 = scmp.eq.s32.totalorder %s21, 0
      %p76 = por %p74, %p75
      %p77 = scmp.ne.s32.totalorder %s69, %s71
      %p78 = scmp.eq.s32.totalorder %s26, 1
      %p79 = por %p77, %p78
      %p80 = scmp.ne.s32.totalorder %s71, %s72
      %p81 = scmp.eq.s32.totalorder %s26, 0
      %p82 = por %p80, %p81
      %p83 = scmp.ne.s32.totalorder %s71, %s72
      %p84 = scmp.eq.s32.totalorder %s27, 1
      %p85 = por %p83, %p84
      %p87 = scmp.ne.s32.totalorder %s72, %s86
      %p88 = scmp.eq.s32.totalorder %s27, 0
      %p89 = por %p87, %p88
      %s91 = sadd.s32 %s90, 1
      %p94 = scmp.eq.s32.totalorder %s21, 1
      %p95 = scmp.ne.s32.totalorder %s90, %s92
      %p96 = scmp.eq.s32.totalorder %s21, 0
      %p97 = por %p95, %p96
      %p98 = scmp.ne.s32.totalorder %s90, %s92
      %p99 = scmp.eq.s32.totalorder %s26, 1
      %p100 = por %p98, %p99
      %p101 = scmp.ne.s32.totalorder %s92, %s93
      %p102 = scmp.eq.s32.totalorder %s26, 0
      %p103 = por %p101, %p102
      %p104 = scmp.ne.s32.totalorder %s92, %s93
      %p105 = scmp.eq.s32.totalorder %s27, 1
      %p106 = por %p104, %p105
      %p108 = scmp.ne.s32.totalorder %s93, %s107
      %p109 = scmp.eq.s32.totalorder %s27, 0
      %p110 = por %p108, %p109
      %s111 = ssub.s32 %s29, %s36
      %s112 = ssub.s32 %s28, %s40
      %s113 = sor.u32 %s111, %s112
      %p114 = scmp.eq.s32.totalorder %s113, 0
      %s116 = sadd.s32 %s115, 1
      %s117 = scalar_select %p114, %s115, %s116
      %p120 = pneg %p114
      %p121 = scmp.eq.s32.totalorder %s21, 1
      %p122 = por %p120, %p121
      %p123 = scmp.ne.s32.totalorder %s115, %s118
      %p124 = scmp.eq.s32.totalorder %s21, 0
      %p125 = por %p123, %p124
      %p126 = scmp.ne.s32.totalorder %s115, %s118
      %p127 = scmp.eq.s32.totalorder %s26, 1
      %p128 = por %p126, %p127
      %p129 = scmp.ne.s32.totalorder %s118, %s119
      %p130 = scmp.eq.s32.totalorder %s26, 0
      %p131 = por %p129, %p130
      %p132 = scmp.ne.s32.totalorder %s118, %s119
      %p133 = scmp.eq.s32.totalorder %s27, 1
      %p134 = por %p132, %p133
      %p136 = scmp.ne.s32.totalorder %s119, %s135
      %p137 = scmp.eq.s32.totalorder %s27, 0
      %p138 = por %p136, %p137
      %s139 = ssub.s32 %s28, %s40
      %p140 = scmp.eq.s32.totalorder %s139, 0
      %s142 = sadd.s32 %s141, 1
      %s143 = scalar_select %p140, %s141, %s142
      %p146 = pneg %p140
      %p147 = scmp.eq.s32.totalorder %s21, 1
      %p148 = por %p146, %p147
      %p149 = scmp.ne.s32.totalorder %s141, %s144
      %p150 = scmp.eq.s32.totalorder %s21, 0
      %p151 = por %p149, %p150
      %p152 = scmp.ne.s32.totalorder %s141, %s144
      %p153 = scmp.eq.s32.totalorder %s26, 1
      %p154 = por %p152, %p153
      %p155 = scmp.ne.s32.totalorder %s144, %s145
      %p156 = scmp.eq.s32.totalorder %s26, 0
      %p157 = por %p155, %p156
      %p158 = scmp.ne.s32.totalorder %s144, %s145
      %p159 = scmp.eq.s32.totalorder %s27, 1
      %p160 = por %p158, %p159
      %p162 = scmp.ne.s32.totalorder %s145, %s161
      %p163 = scmp.eq.s32.totalorder %s27, 0
      %p164 = por %p162, %p163
      %p165 = scmp.le.s32.totalorder 1, %s21
      %p166 = scmp.lt.s32.totalorder %s21, 3
      %p167 = pnand %p165, %p166
      %p168 = pneg %p167
      // Predicated region
      $region9: #{tpu_custom_call.1} parent=5 // pred_check
        _
      $region10: #{tpu_custom_call.1} parent=5 // pred_check_branch
        %170 = sbr.rel (%p167) target = $region12
      $region11: #{tpu_custom_call.1} parent=5 // pred_region
        %s171 = ssub.s32 %s21, 1
        // Predicated region
        $region13: #{tpu_custom_call.1} parent=11 // pred_check
          %p172 = pneg %p82
        $region14: #{tpu_custom_call.1} parent=11 // pred_check_branch
          %174 = sbr.rel (%p172) target = $region16
        $region15: #{tpu_custom_call.1} parent=11 // pred_region
          %s176 = ssub.s32 512, 512
          %177 = vsyncadd [#allocation8], %s176
          %s178 = sshll.u32 [#allocation7], 4
          %s179 = int_to_ptr.vmem [resolvable:$true] %s178
          %184 = dma.hbm_to_vmem [thread:$0]  %s1, 512, %s179, [#allocation8], 256, 256, 16
        $region16: #{tpu_custom_call.1} parent=11 // pred_fallthru
          _
        // Predicated region
        $region17: #{tpu_custom_call.1} parent=11 // pred_check
          %p185 = pneg %p103
        $region18: #{tpu_custom_call.1} parent=11 // pred_check_branch
          %187 = sbr.rel (%p185) target = $region20
        $region19: #{tpu_custom_call.1} parent=11 // pred_region
          %s189 = ssub.s32 2048, 2048
          %190 = vsyncadd [#allocation8], %s189
          %s191 = sshll.u32 [#allocation9], 4
          %s192 = int_to_ptr.vmem [resolvable:$true] %s191
          %197 = dma.hbm_to_vmem [thread:$0]  %s2, 2048, %s192, [#allocation8], 128, 128, 8
        $region20: #{tpu_custom_call.1} parent=11 // pred_fallthru
          _
      $region12: #{tpu_custom_call.1} parent=5 // pred_fallthru
        _
      %p198 = scmp.lt.s32.totalorder %s21, 2
      // Predicated region
      $region21: #{tpu_custom_call.1} parent=5 // pred_check
        %p199 = pneg %p198
      $region22: #{tpu_custom_call.1} parent=5 // pred_check_branch
        %201 = sbr.rel (%p199) target = $region24
      $region23: #{tpu_custom_call.1} parent=5 // pred_region
        // Predicated region
        $region25: #{tpu_custom_call.1} parent=23 // pred_check
          %p202 = pneg %p55
        $region26: #{tpu_custom_call.1} parent=23 // pred_check_branch
          %204 = sbr.rel (%p202) target = $region28
        $region27: #{tpu_custom_call.1} parent=23 // pred_region
          %s205 = sand.u32 %s45, 1
          %s206 = scalar_lea.sflag [#allocation5], %s205
          %s207 = sand.u32 %s45, 1
          %s208 = smul.addr %s207, 64
          %s209 = scalar_lea.vmem [#allocation4], %s208
          %s210 = smul.u32 8, %s29
          %s212 = ssub.s32 1024, 1024
          %213 = vsyncadd %s206, %s212
          %s214 = smul.addr %s210, 2
          %s215 = sadd.s32 %s28, %s214
          %s216 = smul.addr %s215, 128
          %s217 = scalar_lea.hbm %s0, %s216
          %s218 = sshll.u32 %s209, 4
          %s219 = int_to_ptr.vmem [resolvable:$true] %s218
          %224 = dma.hbm_to_vmem [thread:$0]  %s217, 1024, %s219, %s206, 256, 128, 8
        $region28: #{tpu_custom_call.1} parent=23 // pred_fallthru
          _
      $region24: #{tpu_custom_call.1} parent=5 // pred_fallthru
        _
      %p225 = scmp.le.s32.totalorder 1, %s21
      %p226 = scmp.lt.s32.totalorder %s21, 3
      %p227 = pnand %p225, %p226
      %p228 = pneg %p227
      // Predicated region
      $region29: #{tpu_custom_call.1} parent=5 // pred_check
        _
      $region30: #{tpu_custom_call.1} parent=5 // pred_check_branch
        %230 = sbr.rel (%p227) target = $region32
      $region31: #{tpu_custom_call.1} parent=5 // pred_region
        %s231 = ssub.s32 %s21, 1
        %s232 = sand.u32 %s48, 1
        %s233 = scalar_lea.sflag [#allocation5], %s232
        %s234 = sand.u32 %s48, 1
        %s235 = smul.addr %s234, 64
        %s236 = scalar_lea.vmem [#allocation4], %s235
        // Predicated region
        $region33: #{tpu_custom_call.1} parent=31 // pred_check
          %p237 = pneg %p61
        $region34: #{tpu_custom_call.1} parent=31 // pred_check_branch
          %239 = sbr.rel (%p237) target = $region36
        $region35: #{tpu_custom_call.1} parent=31 // pred_region
          %240 = dma.done %s233, 1024
        $region36: #{tpu_custom_call.1} parent=31 // pred_fallthru
          _
        // Predicated region
        $region37: #{tpu_custom_call.1} parent=31 // pred_check
          %p241 = pneg %p82
        $region38: #{tpu_custom_call.1} parent=31 // pred_check_branch
          %243 = sbr.rel (%p241) target = $region40
        $region39: #{tpu_custom_call.1} parent=31 // pred_region
          %244 = dma.done [#allocation8], 512
        $region40: #{tpu_custom_call.1} parent=31 // pred_fallthru
          _
        // Predicated region
        $region41: #{tpu_custom_call.1} parent=31 // pred_check
          %p245 = pneg %p103
        $region42: #{tpu_custom_call.1} parent=31 // pred_check_branch
          %247 = sbr.rel (%p245) target = $region44
        $region43: #{tpu_custom_call.1} parent=31 // pred_region
          %248 = dma.done [#allocation8], 2048
        $region44: #{tpu_custom_call.1} parent=31 // pred_fallthru
          _
        %s249 = sand.u32 %s48, 1
        %s250 = scalar_lea.sflag [#allocation5], %s249
        %s251 = sand.u32 %s48, 1
        %s252 = smul.addr %s251, 64
        %s253 = scalar_lea.vmem [#allocation4], %s252
        %p254 = pneg %p61
        %p255 = pneg %p58
        %p256 = pneg %p82
        %p257 = pneg %p79
        %p258 = pneg %p103
        %p259 = pneg %p100
        %p260 = pneg %p131
        %p261 = pneg %p128
        %s262 = sand.u32 %s118, 1
        %s263 = scalar_lea.sflag [#allocation6], %s262
        %s264 = sand.u32 %s118, 1
        %s265 = smul.addr %s264, 64
        %s266 = scalar_lea.vmem [#allocation10], %s265
        %p267 = pneg %p157
        %p268 = pneg %p154
        %s269 = sand.u32 %s144, 1
        %s270 = scalar_lea.sflag [#allocation12], %s269
        %s271 = sand.u32 %s144, 1
        %s272 = smul.addr %s271, 8
        %s273 = scalar_lea.vmem [#allocation11], %s272
        %s274 = smul.u32 8, %s31
        %s275 = smul.u32 8, %s31
        %p276 = scmp.eq.s32.totalorder %s31, 0
        // Predicated region
        $region45: #{tpu_custom_call.1} parent=31 // pred_check
          %p277 = pneg %p276
        $region46: #{tpu_custom_call.1} parent=31 // pred_check_branch
          %279 = sbr.rel (%p277) target = $region48
        $region47: #{tpu_custom_call.1} parent=31 // pred_region
          %280 = vst [vmem:[%s273] sm:$0xff] 0.0
        $region48: #{tpu_custom_call.1} parent=31 // pred_fallthru
          _
        %v281 = vld [vmem:[%s236] sm:$0xff]
        %v282 = vld [vmem:[%s236 + $0x8] sm:$0xff]
        %v283 = vld [vmem:[%s236 + $0x10] sm:$0xff]
        %v284 = vld [vmem:[%s236 + $0x18] sm:$0xff]
        %v285 = vld [vmem:[%s236 + $0x20] sm:$0xff]
        %v286 = vld [vmem:[%s236 + $0x28] sm:$0xff]
        %v287 = vld [vmem:[%s236 + $0x30] sm:$0xff]
        %v288 = vld [vmem:[%s236 + $0x38] sm:$0xff]
        %v289 = vld [vmem:[#allocation7] sm:$0xff]
        %v290 = vld [vmem:[#allocation7 + $0x8] sm:$0xff]
        %v291 = vld [vmem:[#allocation7 + $0x10] sm:$0xff]
        %v292 = vld [vmem:[#allocation7 + $0x18] sm:$0xff]
        %vm293 = vcmask 130048
        %v295 = vsel %vm293, %v281, 0
        %v298 = vsel %vm293, %v282, 0
        %v301 = vsel %vm293, %v283, 0
        %v304 = vsel %vm293, %v284, 0
        %v307 = vsel %vm293, %v285, 0
        %v310 = vsel %vm293, %v286, 0
        %v313 = vsel %vm293, %v287, 0
        %v316 = vsel %vm293, %v288, 0
        %318 = vmatprep.subr.mxu0 %v290
        %319 = vmatpush1.msra.mxu0 %v289
        %320 = vmatprep.subr.mxu0 %v292
        %321 = vmatpush1.msra.mxu0 %v291
        %322 = vmatprep.subr.mxu0 0.0
        %323 = vmatpush1.msra.mxu0 0.0
        %324 = vmatprep.subr.mxu0 0.0
        %325 = vmatpush1.msra.mxu0 0.0
        %326 = vmatprep.subr.mxu0 0.0
        %327 = vmatpush1.msra.mxu0 0.0
        %328 = vmatprep.subr.mxu0 0.0
        %329 = vmatpush1.msra.mxu0 0.0
        %330 = vmatprep.subr.mxu0 0.0
        %331 = vmatpush1.msra.mxu0 0.0
        %332 = vmatprep.subr.mxu0 0.0
        %333 = vmatpush1.msra.mxu0 0.0
        %334 = vmatprep.subr.mxu0 0.0
        %335 = vmatpush1.msra.mxu0 0.0
        %336 = vmatprep.subr.mxu0 0.0
        %337 = vmatpush1.msra.mxu0 0.0
        %338 = vmatprep.subr.mxu0 0.0
        %339 = vmatpush1.msra.mxu0 0.0
        %340 = vmatprep.subr.mxu0 0.0
        %341 = vmatpush1.msra.mxu0 0.0
        %342 = vmatprep.subr.mxu0 0.0
        %343 = vmatpush1.msra.mxu0 0.0
        %344 = vmatprep.subr.mxu0 0.0
        %345 = vmatpush1.msra.mxu0 0.0
        %346 = vmatprep.subr.mxu0 0.0
        %347 = vmatpush1.msra.mxu0 0.0
        %348 = vmatprep.subr.mxu0 0.0
        %349 = vmatpush1.msra.mxu0 0.0
        %350 = vmatprep.subr.mxu0 0.0
        %351 = vmatpush1.msra.mxu0 0.0
        %352 = vmatprep.subr.mxu0 0.0
        %353 = vmatpush1.msra.mxu0 0.0
        %354 = vmatprep.subr.mxu0 0.0
        %355 = vmatpush1.msra.mxu0 0.0
        %356 = vmatprep.subr.mxu0 0.0
        %357 = vmatpush1.msra.mxu0 0.0
        %358 = vmatprep.subr.mxu0 0.0
        %359 = vmatpush1.msra.mxu0 0.0
        %360 = vmatprep.subr.mxu0 0.0
        %361 = vmatpush1.msra.mxu0 0.0
        %362 = vmatprep.subr.mxu0 0.0
        %363 = vmatpush1.msra.mxu0 0.0
        %364 = vmatprep.subr.mxu0 0.0
        %365 = vmatpush1.msra.mxu0 0.0
        %366 = vmatprep.subr.mxu0 0.0
        %367 = vmatpush1.msra.mxu0 0.0
        %368 = vmatprep.subr.mxu0 0.0
        %369 = vmatpush1.msra.mxu0 0.0
        %370 = vmatprep.subr.mxu0 0.0
        %371 = vmatpush1.msra.mxu0 0.0
        %372 = vmatprep.subr.mxu0 0.0
        %373 = vmatpush1.msra.mxu0 0.0
        %374 = vmatprep.subr.mxu0 0.0
        %375 = vmatpush1.msra.mxu0 0.0
        %376 = vmatprep.subr.mxu0 0.0
        %377 = vmatpush1.msra.mxu0 0.0
        %378 = vmatprep.subr.mxu0 0.0
        %379 = vmatpush1.msra.mxu0 0.0
        %380 = vmatprep.subr.mxu0 0.0
        %381 = vmatpush1.msra.mxu0 0.0
        %382 = vmatprep.mubr.f32.mxu0 0.0
        %383 = vmatmul.mubr.f32.gmra.mrb[0].mxu0 %v295
        %v384 = vpop.f32.mrb[0].mxu0
        %v385 = vadd.f32 0.0, %v384
        %v386 = vpop.f32.mrb[0].mxu0
        %v387 = vadd.f32 0.0, %v386
        %388 = vmatprep.mubr.f32.mxu0 0.0
        %389 = vmatmul.mubr.f32.gmra.mrb[0].mxu0 %v298
        %v390 = vpop.f32.mrb[0].mxu0
        %v391 = vadd.f32 0.0, %v390
        %v392 = vpop.f32.mrb[0].mxu0
        %v393 = vadd.f32 0.0, %v392
        %394 = vmatprep.mubr.f32.mxu0 0.0
        %395 = vmatmul.mubr.f32.gmra.mrb[0].mxu0 %v301
        %v396 = vpop.f32.mrb[0].mxu0
        %v397 = vadd.f32 0.0, %v396
        %v398 = vpop.f32.mrb[0].mxu0
        %v399 = vadd.f32 0.0, %v398
        %400 = vmatprep.mubr.f32.mxu0 0.0
        %401 = vmatmul.mubr.f32.gmra.mrb[0].mxu0 %v304
        %v402 = vpop.f32.mrb[0].mxu0
        %v403 = vadd.f32 0.0, %v402
        %v404 = vpop.f32.mrb[0].mxu0
        %v405 = vadd.f32 0.0, %v404
        %406 = vmatprep.mubr.f32.mxu0 0.0
        %407 = vmatmul.mubr.f32.gmra.mrb[0].mxu0 %v307
        %v408 = vpop.f32.mrb[0].mxu0
        %v409 = vadd.f32 0.0, %v408
        %v410 = vpop.f32.mrb[0].mxu0
        %v411 = vadd.f32 0.0, %v410
        %412 = vmatprep.mubr.f32.mxu0 0.0
        %413 = vmatmul.mubr.f32.gmra.mrb[0].mxu0 %v310
        %v414 = vpop.f32.mrb[0].mxu0
        %v415 = vadd.f32 0.0, %v414
        %v416 = vpop.f32.mrb[0].mxu0
        %v417 = vadd.f32 0.0, %v416
        %418 = vmatprep.mubr.f32.mxu0 0.0
        %419 = vmatmul.mubr.f32.gmra.mrb[0].mxu0 %v313
        %v420 = vpop.f32.mrb[0].mxu0
        %v421 = vadd.f32 0.0, %v420
        %v422 = vpop.f32.mrb[0].mxu0
        %v423 = vadd.f32 0.0, %v422
        %424 = vmatprep.mubr.f32.mxu0 0.0
        %425 = vmatmul.mubr.f32.gmra.mrb[0].mxu0 %v316
        %v426 = vpop.f32.mrb[0].mxu0
        %v427 = vadd.f32 0.0, %v426
        %v428 = vpop.f32.mrb[0].mxu0
        %v429 = vadd.f32 0.0, %v428
        %430 = vdwg.mxu0
        %v431 = vxor.u32 %v387, 2147483648
        %v432 = vxor.u32 %v393, 2147483648
        %v433 = vxor.u32 %v399, 2147483648
        %v434 = vxor.u32 %v405, 2147483648
        %v435 = vxor.u32 %v411, 2147483648
        %v436 = vxor.u32 %v417, 2147483648
        %v437 = vxor.u32 %v423, 2147483648
        %v438 = vxor.u32 %v429, 2147483648
        %v439 = vmul.f32 %v431, 1.442695
        %v440 = vpow.pop %v439
        %v441 = vmul.f32 %v432, 1.442695
        %v442 = vpow.pop %v441
        %v443 = vmul.f32 %v433, 1.442695
        %v444 = vpow.pop %v443
        %v445 = vmul.f32 %v434, 1.442695
        %v446 = vpow.pop %v445
        %v447 = vmul.f32 %v435, 1.442695
        %v448 = vpow.pop %v447
        %v449 = vmul.f32 %v436, 1.442695
        %v450 = vpow.pop %v449
        %v451 = vmul.f32 %v437, 1.442695
        %v452 = vpow.pop %v451
        %v453 = vmul.f32 %v438, 1.442695
        %v454 = vpow.pop %v453
        %v455 = vadd.f32 %v440, 1.0
        %v456 = vadd.f32 %v442, 1.0
        %v457 = vadd.f32 %v444, 1.0
        %v458 = vadd.f32 %v446, 1.0
        %v459 = vadd.f32 %v448, 1.0
        %v460 = vadd.f32 %v450, 1.0
        %v461 = vadd.f32 %v452, 1.0
        %v462 = vadd.f32 %v454, 1.0
        %v463 = vrcp.pop %v455
        %v464 = vmul.f32 1.0, %v463
        %v465 = vrcp.pop %v456
        %v466 = vmul.f32 1.0, %v465
        %v467 = vrcp.pop %v457
        %v468 = vmul.f32 1.0, %v467
        %v469 = vrcp.pop %v458
        %v470 = vmul.f32 1.0, %v469
        %v471 = vrcp.pop %v459
        %v472 = vmul.f32 1.0, %v471
        %v473 = vrcp.pop %v460
        %v474 = vmul.f32 1.0, %v473
        %v475 = vrcp.pop %v461
        %v476 = vmul.f32 1.0, %v475
        %v477 = vrcp.pop %v462
        %v478 = vmul.f32 1.0, %v477
        %vm479 = vcmp.ge.f32.partialorder %v385, 0.0
        %vm480 = vcmp.ge.f32.partialorder %v391, 0.0
        %vm481 = vcmp.ge.f32.partialorder %v397, 0.0
        %vm482 = vcmp.ge.f32.partialorder %v403, 0.0
        %vm483 = vcmp.ge.f32.partialorder %v409, 0.0
        %vm484 = vcmp.ge.f32.partialorder %v415, 0.0
        %vm485 = vcmp.ge.f32.partialorder %v421, 0.0
        %vm486 = vcmp.ge.f32.partialorder %v427, 0.0
        %v487 = vadd.f32 %v385, 0.5
        %v488 = vadd.f32 %v391, 0.5
        %v489 = vadd.f32 %v397, 0.5
        %v490 = vadd.f32 %v403, 0.5
        %v491 = vadd.f32 %v409, 0.5
        %v492 = vadd.f32 %v415, 0.5
        %v493 = vadd.f32 %v421, 0.5
        %v494 = vadd.f32 %v427, 0.5
        %v495 = vxor.u32 %v385, 2147483648
        %v496 = vxor.u32 %v391, 2147483648
        %v497 = vxor.u32 %v397, 2147483648
        %v498 = vxor.u32 %v403, 2147483648
        %v499 = vxor.u32 %v409, 2147483648
        %v500 = vxor.u32 %v415, 2147483648
        %v501 = vxor.u32 %v421, 2147483648
        %v502 = vxor.u32 %v427, 2147483648
        %v503 = vmul.f32 %v495, 1.442695
        %v504 = vpow.pop %v503
        %v505 = vmul.f32 %v496, 1.442695
        %v506 = vpow.pop %v505
        %v507 = vmul.f32 %v497, 1.442695
        %v508 = vpow.pop %v507
        %v509 = vmul.f32 %v498, 1.442695
        %v510 = vpow.pop %v509
        %v511 = vmul.f32 %v499, 1.442695
        %v512 = vpow.pop %v511
        %v513 = vmul.f32 %v500, 1.442695
        %v514 = vpow.pop %v513
        %v515 = vmul.f32 %v501, 1.442695
        %v516 = vpow.pop %v515
        %v517 = vmul.f32 %v502, 1.442695
        %v518 = vpow.pop %v517
        %v519 = vadd.f32 %v504, 1.0
        %v520 = vadd.f32 %v506, 1.0
        %v521 = vadd.f32 %v508, 1.0
        %v522 = vadd.f32 %v510, 1.0
        %v523 = vadd.f32 %v512, 1.0
        %v524 = vadd.f32 %v514, 1.0
        %v525 = vadd.f32 %v516, 1.0
        %v526 = vadd.f32 %v518, 1.0
        %v527 = vrcp.pop %v519
        %v528 = vmul.f32 1.0, %v527
        %v529 = vrcp.pop %v520
        %v530 = vmul.f32 1.0, %v529
        %v531 = vrcp.pop %v521
        %v532 = vmul.f32 1.0, %v531
        %v533 = vrcp.pop %v522
        %v534 = vmul.f32 1.0, %v533
        %v535 = vrcp.pop %v523
        %v536 = vmul.f32 1.0, %v535
        %v537 = vrcp.pop %v524
        %v538 = vmul.f32 1.0, %v537
        %v539 = vrcp.pop %v525
        %v540 = vmul.f32 1.0, %v539
        %v541 = vrcp.pop %v526
        %v542 = vmul.f32 1.0, %v541
        %v543 = vsel %vm479, %v487, %v528
        %v544 = vsel %vm480, %v488, %v530
        %v545 = vsel %vm481, %v489, %v532
        %v546 = vsel %vm482, %v490, %v534
        %v547 = vsel %vm483, %v491, %v536
        %v548 = vsel %vm484, %v492, %v538
        %v549 = vsel %vm485, %v493, %v540
        %v550 = vsel %vm486, %v494, %v542
        %v551 = vsub.f32 1.0, %v464
        %v552 = vsub.f32 1.0, %v466
        %v553 = vsub.f32 1.0, %v468
        %v554 = vsub.f32 1.0, %v470
        %v555 = vsub.f32 1.0, %v472
        %v556 = vsub.f32 1.0, %v474
        %v557 = vsub.f32 1.0, %v476
        %v558 = vsub.f32 1.0, %v478
        %559 = vst [vmem:[#allocation2] sm:$0xff] %v551
        %560 = vst [vmem:[#allocation2 + $0x8] sm:$0xff] %v552
        %561 = vst [vmem:[#allocation2 + $0x10] sm:$0xff] %v553
        %562 = vst [vmem:[#allocation2 + $0x18] sm:$0xff] %v554
        %563 = vst [vmem:[#allocation2 + $0x20] sm:$0xff] %v555
        %564 = vst [vmem:[#allocation2 + $0x28] sm:$0xff] %v556
        %565 = vst [vmem:[#allocation2 + $0x30] sm:$0xff] %v557
        %566 = vst [vmem:[#allocation2 + $0x38] sm:$0xff] %v558
        %v567 = vmul.f32 %v464, %v543
        %v568 = vmul.f32 %v466, %v544
        %v569 = vmul.f32 %v468, %v545
        %v570 = vmul.f32 %v470, %v546
        %v571 = vmul.f32 %v472, %v547
        %v572 = vmul.f32 %v474, %v548
        %v573 = vmul.f32 %v476, %v549
        %v574 = vmul.f32 %v478, %v550
        %575 = vst [vmem:[#allocation3] sm:$0xff] %v567
        %576 = vst [vmem:[#allocation3 + $0x8] sm:$0xff] %v568
        %577 = vst [vmem:[#allocation3 + $0x10] sm:$0xff] %v569
        %578 = vst [vmem:[#allocation3 + $0x18] sm:$0xff] %v570
        %579 = vst [vmem:[#allocation3 + $0x20] sm:$0xff] %v571
        %580 = vst [vmem:[#allocation3 + $0x28] sm:$0xff] %v572
        %581 = vst [vmem:[#allocation3 + $0x30] sm:$0xff] %v573
        %582 = vst [vmem:[#allocation3 + $0x38] sm:$0xff] %v574
        %v583 = vld [vmem:[%s273] sm:$0xff]
        %v584 = vld [vmem:[#allocation2] sm:$0xff]
        %v585 = vmul.f32 %v584, %v583
        %v586 = vld [vmem:[#allocation3] sm:$0xff]
        %v587 = vadd.f32 %v585, %v586
        %588 = vst [vmem:[#allocation2] sm:$0xff] %v587
        %s589 = scalar_lea.vmem [#allocation2], 8
        %v590 = vld [vmem:[%s589] sm:$0xff]
        %v591 = vmul.f32 %v590, %v587
        %s592 = scalar_lea.vmem [#allocation3], 8
        %v593 = vld [vmem:[%s592] sm:$0xff]
        %v594 = vadd.f32 %v591, %v593
        %595 = vst [vmem:[%s589] sm:$0xff] %v594
        %s596 = scalar_lea.vmem [#allocation2], 16
        %v597 = vld [vmem:[%s596] sm:$0xff]
        %v598 = vmul.f32 %v597, %v594
        %s599 = scalar_lea.vmem [#allocation3], 16
        %v600 = vld [vmem:[%s599] sm:$0xff]
        %v601 = vadd.f32 %v598, %v600
        %602 = vst [vmem:[%s596] sm:$0xff] %v601
        %s603 = scalar_lea.vmem [#allocation2], 24
        %v604 = vld [vmem:[%s603] sm:$0xff]
        %v605 = vmul.f32 %v604, %v601
        %s606 = scalar_lea.vmem [#allocation3], 24
        %v607 = vld [vmem:[%s606] sm:$0xff]
        %v608 = vadd.f32 %v605, %v607
        %609 = vst [vmem:[%s603] sm:$0xff] %v608
        %s610 = scalar_lea.vmem [#allocation2], 32
        %v611 = vld [vmem:[%s610] sm:$0xff]
        %v612 = vmul.f32 %v611, %v608
        %s613 = scalar_lea.vmem [#allocation3], 32
        %v614 = vld [vmem:[%s613] sm:$0xff]
        %v615 = vadd.f32 %v612, %v614
        %616 = vst [vmem:[%s610] sm:$0xff] %v615
        %s617 = scalar_lea.vmem [#allocation2], 40
        %v618 = vld [vmem:[%s617] sm:$0xff]
        %v619 = vmul.f32 %v618, %v615
        %s620 = scalar_lea.vmem [#allocation3], 40
        %v621 = vld [vmem:[%s620] sm:$0xff]
        %v622 = vadd.f32 %v619, %v621
        %623 = vst [vmem:[%s617] sm:$0xff] %v622
        %s624 = scalar_lea.vmem [#allocation2], 48
        %v625 = vld [vmem:[%s624] sm:$0xff]
        %v626 = vmul.f32 %v625, %v622
        %s627 = scalar_lea.vmem [#allocation3], 48
        %v628 = vld [vmem:[%s627] sm:$0xff]
        %v629 = vadd.f32 %v626, %v628
        %630 = vst [vmem:[%s624] sm:$0xff] %v629
        %s631 = scalar_lea.vmem [#allocation2], 56
        %v632 = vld [vmem:[%s631] sm:$0xff]
        %v633 = vmul.f32 %v632, %v629
        %s634 = scalar_lea.vmem [#allocation3], 56
        %v635 = vld [vmem:[%s634] sm:$0xff]
        %v636 = vadd.f32 %v633, %v635
        %637 = vst [vmem:[%s631] sm:$0xff] %v636
        %v638 = vld [vmem:[#allocation2] sm:$0xff]
        %v639 = vld [vmem:[#allocation2 + $0x8] sm:$0xff]
        %v640 = vld [vmem:[#allocation2 + $0x10] sm:$0xff]
        %v641 = vld [vmem:[#allocation2 + $0x18] sm:$0xff]
        %v642 = vld [vmem:[#allocation2 + $0x20] sm:$0xff]
        %v643 = vld [vmem:[#allocation2 + $0x28] sm:$0xff]
        %v644 = vld [vmem:[#allocation2 + $0x30] sm:$0xff]
        %v645 = vld [vmem:[#allocation2 + $0x38] sm:$0xff]
        %v646 = vld [vmem:[#allocation9] sm:$0xff]
        %v647 = vld [vmem:[#allocation9 + $0x8] sm:$0xff]
        %v648 = vld [vmem:[#allocation9 + $0x10] sm:$0xff]
        %v649 = vld [vmem:[#allocation9 + $0x18] sm:$0xff]
        %v650 = vld [vmem:[#allocation9 + $0x20] sm:$0xff]
        %v651 = vld [vmem:[#allocation9 + $0x28] sm:$0xff]
        %v652 = vld [vmem:[#allocation9 + $0x30] sm:$0xff]
        %v653 = vld [vmem:[#allocation9 + $0x38] sm:$0xff]
        %v654 = vld [vmem:[#allocation9 + $0x40] sm:$0xff]
        %v655 = vld [vmem:[#allocation9 + $0x48] sm:$0xff]
        %v656 = vld [vmem:[#allocation9 + $0x50] sm:$0xff]
        %v657 = vld [vmem:[#allocation9 + $0x58] sm:$0xff]
        %v658 = vld [vmem:[#allocation9 + $0x60] sm:$0xff]
        %v659 = vld [vmem:[#allocation9 + $0x68] sm:$0xff]
        %v660 = vld [vmem:[#allocation9 + $0x70] sm:$0xff]
        %v661 = vld [vmem:[#allocation9 + $0x78] sm:$0xff]
        %662 = vmatprep.subr.mxu0 0.0
        %663 = vmatpush1.msra.mxu0 %v646
        %664 = vmatprep.subr.mxu0 0.0
        %665 = vmatpush1.msra.mxu0 %v647
        %666 = vmatprep.subr.mxu0 0.0
        %667 = vmatpush1.msra.mxu0 %v648
        %668 = vmatprep.subr.mxu0 0.0
        %669 = vmatpush1.msra.mxu0 %v649
        %670 = vmatprep.subr.mxu0 0.0
        %671 = vmatpush1.msra.mxu0 %v650
        %672 = vmatprep.subr.mxu0 0.0
        %673 = vmatpush1.msra.mxu0 %v651
        %674 = vmatprep.subr.mxu0 0.0
        %675 = vmatpush1.msra.mxu0 %v652
        %676 = vmatprep.subr.mxu0 0.0
        %677 = vmatpush1.msra.mxu0 %v653
        %678 = vmatprep.subr.mxu0 0.0
        %679 = vmatpush1.msra.mxu0 %v654
        %680 = vmatprep.subr.mxu0 0.0
        %681 = vmatpush1.msra.mxu0 %v655
        %682 = vmatprep.subr.mxu0 0.0
        %683 = vmatpush1.msra.mxu0 %v656
        %684 = vmatprep.subr.mxu0 0.0
        %685 = vmatpush1.msra.mxu0 %v657
        %686 = vmatprep.subr.mxu0 0.0
        %687 = vmatpush1.msra.mxu0 %v658
        %688 = vmatprep.subr.mxu0 0.0
        %689 = vmatpush1.msra.mxu0 %v659
        %690 = vmatprep.subr.mxu0 0.0
        %691 = vmatpush1.msra.mxu0 %v660
        %692 = vmatprep.subr.mxu0 0.0
        %693 = vmatpush1.msra.mxu0 %v661
        %694 = vmatprep.subr.mxu0 0.0
        %695 = vmatpush1.msra.mxu0 0.0
        %696 = vmatprep.subr.mxu0 0.0
        %697 = vmatpush1.msra.mxu0 0.0
        %698 = vmatprep.subr.mxu0 0.0
        %699 = vmatpush1.msra.mxu0 0.0
        %700 = vmatprep.subr.mxu0 0.0
        %701 = vmatpush1.msra.mxu0 0.0
        %702 = vmatprep.subr.mxu0 0.0
        %703 = vmatpush1.msra.mxu0 0.0
        %704 = vmatprep.subr.mxu0 0.0
        %705 = vmatpush1.msra.mxu0 0.0
        %706 = vmatprep.subr.mxu0 0.0
        %707 = vmatpush1.msra.mxu0 0.0
        %708 = vmatprep.subr.mxu0 0.0
        %709 = vmatpush1.msra.mxu0 0.0
        %710 = vmatprep.subr.mxu0 0.0
        %711 = vmatpush1.msra.mxu0 0.0
        %712 = vmatprep.subr.mxu0 0.0
        %713 = vmatpush1.msra.mxu0 0.0
        %714 = vmatprep.subr.mxu0 0.0
        %715 = vmatpush1.msra.mxu0 0.0
        %716 = vmatprep.subr.mxu0 0.0
        %717 = vmatpush1.msra.mxu0 0.0
        %718 = vmatprep.subr.mxu0 0.0
        %719 = vmatpush1.msra.mxu0 0.0
        %720 = vmatprep.subr.mxu0 0.0
        %721 = vmatpush1.msra.mxu0 0.0
        %722 = vmatprep.subr.mxu0 0.0
        %723 = vmatpush1.msra.mxu0 0.0
        %724 = vmatprep.subr.mxu0 0.0
        %725 = vmatpush1.msra.mxu0 0.0
        %726 = vmatprep.mubr.f32.mxu0 0.0
        %727 = vmatmul.mubr.f32.gmra.mrb[0].mxu0 %v638
        %v728 = vpop.f32.mrb[0].mxu0
        %v729 = vadd.f32 0.0, %v728
        %v730 = vpop.f32.mrb[0].mxu0
        %731 = vmatprep.mubr.f32.mxu0 0.0
        %732 = vmatmul.mubr.f32.gmra.mrb[0].mxu0 %v639
        %v733 = vpop.f32.mrb[0].mxu0
        %v734 = vadd.f32 0.0, %v733
        %v735 = vpop.f32.mrb[0].mxu0
        %736 = vmatprep.mubr.f32.mxu0 0.0
        %737 = vmatmul.mubr.f32.gmra.mrb[0].mxu0 %v640
        %v738 = vpop.f32.mrb[0].mxu0
        %v739 = vadd.f32 0.0, %v738
        %v740 = vpop.f32.mrb[0].mxu0
        %741 = vmatprep.mubr.f32.mxu0 0.0
        %742 = vmatmul.mubr.f32.gmra.mrb[0].mxu0 %v641
        %v743 = vpop.f32.mrb[0].mxu0
        %v744 = vadd.f32 0.0, %v743
        %v745 = vpop.f32.mrb[0].mxu0
        %746 = vmatprep.mubr.f32.mxu0 0.0
        %747 = vmatmul.mubr.f32.gmra.mrb[0].mxu0 %v642
        %v748 = vpop.f32.mrb[0].mxu0
        %v749 = vadd.f32 0.0, %v748
        %v750 = vpop.f32.mrb[0].mxu0
        %751 = vmatprep.mubr.f32.mxu0 0.0
        %752 = vmatmul.mubr.f32.gmra.mrb[0].mxu0 %v643
        %v753 = vpop.f32.mrb[0].mxu0
        %v754 = vadd.f32 0.0, %v753
        %v755 = vpop.f32.mrb[0].mxu0
        %756 = vmatprep.mubr.f32.mxu0 0.0
        %757 = vmatmul.mubr.f32.gmra.mrb[0].mxu0 %v644
        %v758 = vpop.f32.mrb[0].mxu0
        %v759 = vadd.f32 0.0, %v758
        %v760 = vpop.f32.mrb[0].mxu0
        %761 = vmatprep.mubr.f32.mxu0 0.0
        %762 = vmatmul.mubr.f32.gmra.mrb[0].mxu0 %v645
        %v763 = vpop.f32.mrb[0].mxu0
        %v764 = vadd.f32 0.0, %v763
        %v765 = vpop.f32.mrb[0].mxu0
        %766 = vdwg.mxu0
        %767 = vst [vmem:[%s266] sm:$0xff] %v729
        %768 = vst [vmem:[%s266 + $0x8] sm:$0xff] %v734
        %769 = vst [vmem:[%s266 + $0x10] sm:$0xff] %v739
        %770 = vst [vmem:[%s266 + $0x18] sm:$0xff] %v744
        %771 = vst [vmem:[%s266 + $0x20] sm:$0xff] %v749
        %772 = vst [vmem:[%s266 + $0x28] sm:$0xff] %v754
        %773 = vst [vmem:[%s266 + $0x30] sm:$0xff] %v759
        %774 = vst [vmem:[%s266 + $0x38] sm:$0xff] %v764
        %775 = vst [vmem:[%s273] sm:$0xff] %v636
        %s776 = sand.u32 %s118, 1
        %s777 = scalar_lea.sflag [#allocation6], %s776
        %s778 = sand.u32 %s118, 1
        %s779 = smul.addr %s778, 64
        %s780 = scalar_lea.vmem [#allocation10], %s779
        %s781 = sand.u32 %s144, 1
        %s782 = scalar_lea.sflag [#allocation12], %s781
        %s783 = sand.u32 %s144, 1
        %s784 = smul.addr %s783, 8
        %s785 = scalar_lea.vmem [#allocation11], %s784
        // Predicated region
        $region49: #{tpu_custom_call.1} parent=31 // pred_check
          %p786 = pneg %p128
        $region50: #{tpu_custom_call.1} parent=31 // pred_check_branch
          %788 = sbr.rel (%p786) target = $region52
        $region51: #{tpu_custom_call.1} parent=31 // pred_region
          %s789 = smul.u32 8, %s31
          %s791 = ssub.s32 1024, 1024
          %792 = vsyncadd %s777, %s791
          %s793 = smul.addr %s789, 2
          %s794 = sadd.s32 %s30, %s793
          %s795 = smul.addr %s794, 128
          %s796 = scalar_lea.hbm %s3, %s795
          %s797 = sshll.u32 %s780, 4
          %s798 = int_to_ptr.vmem [resolvable:$true] %s797
          %803 = dma.vmem_to_hbm [thread:$0]  %s798, 1024, %s796, %s777, 128, 256, 8
        $region52: #{tpu_custom_call.1} parent=31 // pred_fallthru
          _
        // Predicated region
        $region53: #{tpu_custom_call.1} parent=31 // pred_check
          %p804 = pneg %p154
        $region54: #{tpu_custom_call.1} parent=31 // pred_check_branch
          %806 = sbr.rel (%p804) target = $region56
        $region55: #{tpu_custom_call.1} parent=31 // pred_region
          %s808 = ssub.s32 128, 128
          %809 = vsyncadd %s782, %s808
          %s810 = smul.addr %s30, 128
          %s811 = scalar_lea.hbm %s4, %s810
          %s813 = sshll.u32 %s785, 4
          %s814 = int_to_ptr.vmem [resolvable:$true] %s813
          %816 = dma.vmem_to_hbm [thread:$0]  %s814, 128, %s811, %s782
        $region56: #{tpu_custom_call.1} parent=31 // pred_fallthru
          _
      $region32: #{tpu_custom_call.1} parent=5 // pred_fallthru
        _
      %p817 = scmp.le.s32.totalorder 2, %s21
      // Predicated region
      $region57: #{tpu_custom_call.1} parent=5 // pred_check
        %p818 = pneg %p817
      $region58: #{tpu_custom_call.1} parent=5 // pred_check_branch
        %820 = sbr.rel (%p818) target = $region60
      $region59: #{tpu_custom_call.1} parent=5 // pred_region
        %s821 = ssub.s32 %s21, 2
        // Predicated region
        $region61: #{tpu_custom_call.1} parent=59 // pred_check
          %p822 = pneg %p134
        $region62: #{tpu_custom_call.1} parent=59 // pred_check_branch
          %824 = sbr.rel (%p822) target = $region64
        $region63: #{tpu_custom_call.1} parent=59 // pred_region
          %s825 = sand.u32 %s119, 1
          %s826 = scalar_lea.sflag [#allocation6], %s825
          %s827 = sand.u32 %s119, 1
          %s828 = smul.addr %s827, 64
          %s829 = scalar_lea.vmem [#allocation10], %s828
          %830 = dma.done %s826, 1024
        $region64: #{tpu_custom_call.1} parent=59 // pred_fallthru
          _
        // Predicated region
        $region65: #{tpu_custom_call.1} parent=59 // pred_check
          %p831 = pneg %p160
        $region66: #{tpu_custom_call.1} parent=59 // pred_check_branch
          %833 = sbr.rel (%p831) target = $region68
        $region67: #{tpu_custom_call.1} parent=59 // pred_region
          %s834 = sand.u32 %s145, 1
          %s835 = scalar_lea.sflag [#allocation12], %s834
          %s836 = sand.u32 %s145, 1
          %s837 = smul.addr %s836, 8
          %s838 = scalar_lea.vmem [#allocation11], %s837
          %839 = dma.done %s835, 128
        $region68: #{tpu_custom_call.1} parent=59 // pred_fallthru
          _
      $region60: #{tpu_custom_call.1} parent=5 // pred_fallthru
        _
    $region6: #{tpu_custom_call.1} parent=1 // loop_footer
      %s25 = sadd.s32 1, %s21
    $region7: #{tpu_custom_call.1} parent=1 // loop_footer_branch
      %20 = sbr.rel target = $region3
    $region8: #{tpu_custom_call.1} parent=1 // loop_exit
      _
    %840 = vsyncpa [#allocation5], 1
    %s841 = scalar_lea.sflag [#allocation5], 1
    %842 = vsyncpa %s841, 1
    %843 = vsyncpa [#allocation8], 1
    %844 = vsyncpa [#allocation6], 1
    %s845 = scalar_lea.sflag [#allocation6], 1
    %846 = vsyncpa %s845, 1
    %847 = vsyncpa [#allocation12], 1
    %s848 = scalar_lea.sflag [#allocation12], 1
    %849 = vsyncpa %s848, 1

</llo_original>
